<compile_context>
chip_gen: v5e
topology: v5e:2x2
jax: 0.10.0
libtpu: 0.0.40
codegen_flags: <defaults>
</compile_context>

<pallas_src>
import jax
import jax.numpy as jnp
from jax.experimental import pallas as pl
from jax.experimental.pallas import tpu as pltpu

LANE = 128
NEG_INF = jnp.float32(-1e30)
VMEM_LIMIT_BYTES = 48 * 1024 * 1024  # <= v7x 64 MiB physical; K-tiled footprint is tiny.


def _round_up(x, m):
    return (x + m - 1) // m * m


def _pick_row_tile(n_p):
    """Row tile: large (amortize per-step overhead, big A DMAs, fewer x re-streams)
    but >=2 tiles whenever possible so 'parallel' can shard across v7x's 2 TCs."""
    for t in (1024, 512, 256, 128):
        if n_p % t == 0 and n_p // t >= 2:
            return t
    return n_p  # only hit when n_p == 128


def _pick_k_tile(n_p):
    for t in (1024, 512, 256, 128):
        if n_p % t == 0:
            return t
    return n_p


# --------------------------------------------------------------------------
# Kernel 1:  h = relu( (A_hat @ x) @ W1^T + b1 )        (K-tiled propagation)
# --------------------------------------------------------------------------
def _prop_lin_relu_kernel(a_ref, x_ref, w1t_ref, b1_ref, h_ref, acc_ref):
    k = pl.program_id(1)

    @pl.when(k == 0)
    def _():
        acc_ref[...] = jnp.zeros_like(acc_ref)

    # Partial propagation: int8 A tile dequantized to bf16 on the VPU; MXU
    # accumulates in f32.  The dequant scale is folded into W1^T.
    acc_ref[...] += jnp.dot(a_ref[...].astype(jnp.bfloat16), x_ref[...],
                            preferred_element_type=jnp.float32)

    @pl.when(k == pl.num_programs(1) - 1)
    def _():
        h = jnp.dot(acc_ref[...].astype(jnp.bfloat16), w1t_ref[...],
                    preferred_element_type=jnp.float32) + b1_ref[...]
        h_ref[...] = jnp.maximum(h, 0.0).astype(h_ref.dtype)


# --------------------------------------------------------------------------
# Kernel 2:  out = log_softmax( (A_hat @ h) @ W2^T + b2 , axis=1 )
# --------------------------------------------------------------------------
def _prop_lin_logsoftmax_kernel(a_ref, h_ref, w2t_ref, b2_ref, o_ref, acc_ref):
    k = pl.program_id(1)

    @pl.when(k == 0)
    def _():
        acc_ref[...] = jnp.zeros_like(acc_ref)

    acc_ref[...] += jnp.dot(a_ref[...].astype(jnp.bfloat16), h_ref[...],
                            preferred_element_type=jnp.float32)

    @pl.when(k == pl.num_programs(1) - 1)
    def _():
        # Padded lanes of b2 are -1e30 and W2^T's padded columns are zero, so
        # the padded logit lanes are already masked (no in-kernel iota needed).
        z = jnp.dot(acc_ref[...].astype(jnp.bfloat16), w2t_ref[...],
                    preferred_element_type=jnp.float32) + b2_ref[...]
        m = jnp.max(z, axis=1, keepdims=True)
        s = z - m
        lse = jnp.log(jnp.sum(jnp.exp(s), axis=1, keepdims=True))
        o_ref[...] = (s - lse).astype(o_ref.dtype)


@jax.jit
def gcn_forward(a_hat, x, w1, b1, w2, b2):
    n, f_in = x.shape
    f_out = w2.shape[0]

    # ---- padded / tiled geometry ------------------------------------------
    f_in_p = _round_up(f_in, LANE)
    f_out_p = _round_up(f_out, LANE)
    n_p = _round_up(n, LANE)
    tm = _pick_row_tile(n_p)
    tk = _pick_k_tile(n_p)

    bf = jnp.bfloat16

    # ---- int8-quantize A_hat (symmetric, per-matrix scale) ------------------
    amax = jnp.maximum(jnp.max(jnp.abs(a_hat)), 1e-12)
    a_scale = (amax / 127.0).astype(jnp.float32)
    a_q = jnp.clip(jnp.round(a_hat / a_scale), -127.0, 127.0).astype(jnp.int8)

    # ---- pad + cast operands -----------------------------------------------
    a_p = jnp.zeros((n_p, n_p), jnp.int8).at[:n, :n].set(a_q)
    x_p = jnp.zeros((n_p, f_in_p), bf).at[:n, :f_in].set(x.astype(bf))
    # Fold the dequant scale into the (tiny) weight matrices.
    w1t_p = jnp.zeros((f_in_p, f_in_p), bf).at[:f_in, :f_in].set(
        (w1.T * a_scale).astype(bf))
    b1_p = jnp.zeros((1, f_in_p), jnp.float32).at[0, :f_in].set(b1)
    w2t_p = jnp.zeros((f_in_p, f_out_p), bf).at[:f_in, :f_out].set(
        (w2.T * a_scale).astype(bf))
    # -1e30 in the padded lanes masks the padded logits for log_softmax.
    b2_p = jnp.full((1, f_out_p), NEG_INF, jnp.float32).at[0, :f_out].set(b2)

    grid = (n_p // tm, n_p // tk)
    cparams = pltpu.CompilerParams(
        dimension_semantics=("parallel", "arbitrary"),
        vmem_limit_bytes=VMEM_LIMIT_BYTES,
    )

    # ---- call 1: P1 + lin1 + ReLU ------------------------------------------
    ce1 = pl.CostEstimate(
        flops=2 * n_p * n_p * f_in_p + 2 * n_p * f_in_p * f_in_p,
        transcendentals=0,
        bytes_accessed=n_p * n_p                         # A_hat (int8)
        + (n_p // tm) * n_p * f_in_p * 2                 # x re-streamed per row strip
        + 2 * f_in_p * f_in_p + 4 * f_in_p               # W1^T + b1
        + 2 * n_p * f_in_p,                              # h out (bf16)
    )
    h = pl.pallas_call(
        _prop_lin_relu_kernel,
        out_shape=jax.ShapeDtypeStruct((n_p, f_in_p), bf),
        grid=grid,
        in_specs=[
            pl.BlockSpec((tm, tk), lambda i, k: (i, k)),         # A_hat tile
            pl.BlockSpec((tk, f_in_p), lambda i, k: (k, 0)),     # x K-strip
            pl.BlockSpec((f_in_p, f_in_p), lambda i, k: (0, 0)),  # W1^T
            pl.BlockSpec((1, f_in_p), lambda i, k: (0, 0)),       # b1
        ],
        out_specs=pl.BlockSpec((tm, f_in_p), lambda i, k: (i, 0)),
        scratch_shapes=[pltpu.VMEM((tm, f_in_p), jnp.float32)],
        compiler_params=cparams,
        cost_estimate=ce1,
    )(a_p, x_p, w1t_p, b1_p)

    # ---- call 2: P2 + lin2 + log_softmax -----------------------------------
    ce2 = pl.CostEstimate(
        flops=2 * n_p * n_p * f_in_p + 2 * n_p * f_in_p * f_out_p,
        transcendentals=n_p * f_out_p + n_p,
        bytes_accessed=n_p * n_p
        + (n_p // tm) * n_p * f_in_p * 2
        + 2 * f_in_p * f_out_p + 4 * f_out_p
        + 4 * n_p * f_out_p,
    )
    out_p = pl.pallas_call(
        _prop_lin_logsoftmax_kernel,
        out_shape=jax.ShapeDtypeStruct((n_p, f_out_p), jnp.float32),
        grid=grid,
        in_specs=[
            pl.BlockSpec((tm, tk), lambda i, k: (i, k)),          # A_hat tile
            pl.BlockSpec((tk, f_in_p), lambda i, k: (k, 0)),      # h K-strip
            pl.BlockSpec((f_in_p, f_out_p), lambda i, k: (0, 0)),  # W2^T
            pl.BlockSpec((1, f_out_p), lambda i, k: (0, 0)),       # b2
        ],
        out_specs=pl.BlockSpec((tm, f_out_p), lambda i, k: (i, 0)),
        scratch_shapes=[pltpu.VMEM((tm, f_out_p), jnp.float32)],
        compiler_params=cparams,
        cost_estimate=ce2,
    )(a_p, h, w2t_p, b2_p)

    # strip padding
    return out_p[:n, :f_out]


# --------------------------------------------------------------------------
# plain-JAX glue + precision-matched reference
# --------------------------------------------------------------------------
def build_normalized_adjacency(edge_index, edge_weight, num_nodes):
    """Dense  D^{-1/2} (A + I) D^{-1/2}  from COO edge list."""
    src, dst = edge_index[0], edge_index[1]
    if edge_weight is None:
        edge_weight = jnp.ones((edge_index.shape[1],), dtype=jnp.float32)
    a = jnp.zeros((num_nodes, num_nodes), dtype=jnp.float32)
    a = a.at[dst, src].add(edge_weight)                     # message src -> dst
    a = a + jnp.eye(num_nodes, dtype=jnp.float32)           # self loops
    deg = jnp.sum(a, axis=1)
    d_inv_sqrt = jnp.where(deg > 0, 1.0 / jnp.sqrt(deg), 0.0)
    return d_inv_sqrt[:, None] * a * d_inv_sqrt[None, :]


def reference_forward(a_hat, x, w1, b1, w2, b2):
    """Precision-matched reference (int8 A_hat, bf16 matmul operands, f32 acc).

    Deliberately mirrors the kernel's quantization / mixed precision so the
    comparison isolates indexing/tiling bugs rather than dtype policy.
    """
    bf = jnp.bfloat16
    amax = jnp.maximum(jnp.max(jnp.abs(a_hat)), 1e-12)
    a_scale = (amax / 127.0).astype(jnp.float32)
    a_q = jnp.clip(jnp.round(a_hat / a_scale), -127.0, 127.0).astype(jnp.int8)
    a_bf = a_q.astype(bf)                                   # exact (int8 -> bf16)
    w1t_s = (w1.T * a_scale).astype(bf)
    w2t_s = (w2.T * a_scale).astype(bf)

    p = jnp.dot(a_bf, x.astype(bf), preferred_element_type=jnp.float32)
    h = jnp.maximum(
        jnp.dot(p.astype(bf), w1t_s, preferred_element_type=jnp.float32) + b1, 0.0)
    h = h.astype(bf)                                        # intermediate stored bf16
    p2 = jnp.dot(a_bf, h, preferred_element_type=jnp.float32)
    z = jnp.dot(p2.astype(bf), w2t_s, preferred_element_type=jnp.float32) + b2
    return jax.nn.log_softmax(z, axis=1)


def _make_case(key, num_nodes, in_features, out_features, num_edges):
    k_x, k_e, k_w1, k_b1, k_w2, k_b2, k_ew = jax.random.split(key, 7)
    x = jax.random.normal(k_x, (num_nodes, in_features), dtype=jnp.float32)
    edge_index = jax.random.randint(k_e, (2, num_edges), 0, num_nodes)
    edge_weight = jax.random.uniform(k_ew, (num_edges,), dtype=jnp.float32)
    bound = 1.0 / jnp.sqrt(in_features)
    w1 = jax.random.uniform(k_w1, (in_features, in_features),
                            minval=-bound, maxval=bound, dtype=jnp.float32)
    b1 = jax.random.uniform(k_b1, (in_features,),
                            minval=-bound, maxval=bound, dtype=jnp.float32)
    w2 = jax.random.uniform(k_w2, (out_features, in_features),
                            minval=-bound, maxval=bound, dtype=jnp.float32)
    b2 = jax.random.uniform(k_b2, (out_features,),
                            minval=-bound, maxval=bound, dtype=jnp.float32)
    a_hat = build_normalized_adjacency(edge_index, edge_weight, num_nodes)
    return a_hat, x, w1, b1, w2, b2


if __name__ == "__main__":
    key = jax.random.PRNGKey(0)
    k_small, k_big = jax.random.split(key, 2)

    # Case 1: small graph (single-tile path), matches the module's toy shapes.
    n1, f_in, f_out = 8, 16, 8
    args1 = _make_case(k_small, n1, f_in, f_out, num_edges=24)
    out1 = jax.block_until_ready(gcn_forward(*args1))
    ref1 = reference_forward(*args1)
    assert out1.shape == (n1, f_out)
    assert bool(jnp.all(jnp.isfinite(out1)))
    assert jnp.allclose(out1, ref1, atol=2e-2, rtol=2e-2), (
        float(jnp.max(jnp.abs(out1 - ref1))))

    # Case 2: multi-tile path (n=300 -> n_p=384, grid=(3,3)), exercises K-tiling,
    # row padding and the scratch accumulator across grid steps.
    n2 = 300
    args2 = _make_case(k_big, n2, f_in, f_out, num_edges=1200)
    out2 = jax.block_until_ready(gcn_forward(*args2))
    ref2 = reference_forward(*args2)
    assert out2.shape == (n2, f_out)
    assert bool(jnp.all(jnp.isfinite(out2)))
    assert jnp.allclose(out2, ref2, atol=3e-2, rtol=3e-2), (
        float(jnp.max(jnp.abs(out2 - ref2))))

    print("KERNEL_OK")
</pallas_src>

<mosaic_0001>
module attributes {stable_mosaic.version = 11 : i64} {
  func.func @_prop_lin_relu_kernel(%arg0: i32, %arg1: i32, %arg2: memref<128x128xi8, #tpu.memory_space<vmem>>, %arg3: memref<128x128xbf16, #tpu.memory_space<vmem>>, %arg4: memref<128x128xbf16, #tpu.memory_space<vmem>>, %arg5: memref<1x128xf32, #tpu.memory_space<vmem>>, %arg6: memref<128x128xbf16, #tpu.memory_space<vmem>>, %arg7: memref<128x128xf32, #tpu.memory_space<vmem>>) attributes {dimension_semantics = [#tpu.dimension_semantics<parallel>, #tpu.dimension_semantics<arbitrary>], iteration_bounds = array<i64: 1, 1>, scalar_prefetch = 0 : i64, scratch_operands = 1 : i64, tpu.core_type = #tpu.core_type<tc>, window_params = [{transform_indices = @transform_0, window_bounds = array<i64: 128, 128>}, {transform_indices = @transform_1, window_bounds = array<i64: 128, 128>}, {pipeline_mode = #tpu.pipeline_mode<synchronous>, transform_indices = @transform_2, window_bounds = array<i64: 128, 128>}, {pipeline_mode = #tpu.pipeline_mode<synchronous>, transform_indices = @transform_3, window_bounds = array<i64: 1, 128>}, {transform_indices = @transform_4, window_bounds = array<i64: 128, 128>}]} {
    %c0_i32 = arith.constant 0 : i32
    %0 = arith.cmpi eq, %arg1, %c0_i32 : i32
    %1 = arith.extui %0 : i1 to i32
    %c0_i32_0 = arith.constant 0 : i32
    %2 = arith.cmpi ne, %1, %c0_i32_0 : i32
    scf.if %2 {
      %cst_10 = arith.constant 0.000000e+00 : f32
      %13 = vector.broadcast %cst_10 : f32 to vector<128x128xf32>
      %c0_11 = arith.constant 0 : index
      %c0_12 = arith.constant 0 : index
      %14 = vector.load %arg7[%c0_11, %c0_12] : memref<128x128xf32, #tpu.memory_space<vmem>>, vector<128x128xf32>
      tpu.vector_store %arg7[%c0_11, %c0_12], %13 {strides = array<i32>} : memref<128x128xf32, #tpu.memory_space<vmem>>, vector<128x128xf32>,
    } else {
    }
    %c0 = arith.constant 0 : index
    %c0_1 = arith.constant 0 : index
    %3 = vector.load %arg7[%c0, %c0_1] : memref<128x128xf32, #tpu.memory_space<vmem>>, vector<128x128xf32>
    %c0_2 = arith.constant 0 : index
    %c0_3 = arith.constant 0 : index
    %4 = vector.load %arg2[%c0_2, %c0_3] : memref<128x128xi8, #tpu.memory_space<vmem>>, vector<128x128xi8>
    %5 = arith.sitofp %4 : vector<128x128xi8> to vector<128x128xbf16>
    %c0_4 = arith.constant 0 : index
    %c0_5 = arith.constant 0 : index
    %6 = vector.load %arg3[%c0_4, %c0_5] : memref<128x128xbf16, #tpu.memory_space<vmem>>, vector<128x128xbf16>
    %cst = arith.constant dense<0.000000e+00> : vector<128x128xf32>
    %7 = tpu.matmul %5, %6, %cst {dimension_numbers = #tpu.dot_dimension_numbers<[1], [0], [0], [1], [0, 0, 1, 1], [], []>} : vector<128x128xbf16>, vector<128x128xbf16>, vector<128x128xf32> -> vector<128x128xf32>
    %8 = arith.addf %3, %7 : vector<128x128xf32>
    %c0_6 = arith.constant 0 : index
    %c0_7 = arith.constant 0 : index
    %9 = vector.load %arg7[%c0_6, %c0_7] : memref<128x128xf32, #tpu.memory_space<vmem>>, vector<128x128xf32>
    tpu.vector_store %arg7[%c0_6, %c0_7], %8 {strides = array<i32>} : memref<128x128xf32, #tpu.memory_space<vmem>>, vector<128x128xf32>,
    %c0_i32_8 = arith.constant 0 : i32
    %10 = arith.cmpi eq, %arg1, %c0_i32_8 : i32
    %11 = arith.extui %10 : i1 to i32
    %c0_i32_9 = arith.constant 0 : i32
    %12 = arith.cmpi ne, %11, %c0_i32_9 : i32
    scf.if %12 {
      %c0_10 = arith.constant 0 : index
      %c0_11 = arith.constant 0 : index
      %13 = vector.load %arg7[%c0_10, %c0_11] : memref<128x128xf32, #tpu.memory_space<vmem>>, vector<128x128xf32>
      %14 = arith.truncf %13 : vector<128x128xf32> to vector<128x128xbf16>
      %c0_12 = arith.constant 0 : index
      %c0_13 = arith.constant 0 : index
      %15 = vector.load %arg4[%c0_12, %c0_13] : memref<128x128xbf16, #tpu.memory_space<vmem>>, vector<128x128xbf16>
      %cst_14 = arith.constant dense<0.000000e+00> : vector<128x128xf32>
      %16 = tpu.matmul %14, %15, %cst_14 {dimension_numbers = #tpu.dot_dimension_numbers<[1], [0], [0], [1], [0, 0, 1, 1], [], []>} : vector<128x128xbf16>, vector<128x128xbf16>, vector<128x128xf32> -> vector<128x128xf32>
      %c0_15 = arith.constant 0 : index
      %c0_16 = arith.constant 0 : index
      %17 = vector.load %arg5[%c0_15, %c0_16] : memref<1x128xf32, #tpu.memory_space<vmem>>, vector<1x128xf32>
      %18 = vector.broadcast %17 : vector<1x128xf32> to vector<128x128xf32>
      %19 = arith.addf %16, %18 : vector<128x128xf32>
      %cst_17 = arith.constant 0.000000e+00 : f32
      %20 = vector.broadcast %cst_17 : f32 to vector<128x128xf32>
      %21 = arith.maximumf %19, %20 : vector<128x128xf32>
      %22 = arith.truncf %21 : vector<128x128xf32> to vector<128x128xbf16>
      %c0_18 = arith.constant 0 : index
      %c0_19 = arith.constant 0 : index
      %23 = vector.load %arg6[%c0_18, %c0_19] : memref<128x128xbf16, #tpu.memory_space<vmem>>, vector<128x128xbf16>
      tpu.vector_store %arg6[%c0_18, %c0_19], %22 {strides = array<i32>} : memref<128x128xbf16, #tpu.memory_space<vmem>>, vector<128x128xbf16>,
    } else {
    }
    return
  }
  func.func @transform_0(%arg0: i32, %arg1: i32) -> (i32, i32) {
    %c0_i32 = arith.constant 0 : i32
    return %arg0, %arg1 : i32, i32
  }
  func.func @transform_1(%arg0: i32, %arg1: i32) -> (i32, i32) {
    %c0_i32 = arith.constant 0 : i32
    %c0_i32_0 = arith.constant 0 : i32
    return %arg1, %c0_i32 : i32, i32
  }
  func.func @transform_2(%arg0: i32, %arg1: i32) -> (i32, i32) {
    %c0_i32 = arith.constant 0 : i32
    %c0_i32_0 = arith.constant 0 : i32
    %c0_i32_1 = arith.constant 0 : i32
    return %c0_i32, %c0_i32_0 : i32, i32
  }
  func.func @transform_3(%arg0: i32, %arg1: i32) -> (i32, i32) {
    %c0_i32 = arith.constant 0 : i32
    %c0_i32_0 = arith.constant 0 : i32
    %c0_i32_1 = arith.constant 0 : i32
    return %c0_i32, %c0_i32_0 : i32, i32
  }
  func.func @transform_4(%arg0: i32, %arg1: i32) -> (i32, i32) {
    %c0_i32 = arith.constant 0 : i32
    %c0_i32_0 = arith.constant 0 : i32
    return %arg0, %c0_i32 : i32, i32
  }
}

module attributes {stable_mosaic.version = 11 : i64} {
  func.func @_prop_lin_logsoftmax_kernel(%arg0: i32, %arg1: i32, %arg2: memref<128x128xi8, #tpu.memory_space<vmem>>, %arg3: memref<128x128xbf16, #tpu.memory_space<vmem>>, %arg4: memref<128x128xbf16, #tpu.memory_space<vmem>>, %arg5: memref<1x128xf32, #tpu.memory_space<vmem>>, %arg6: memref<128x128xf32, #tpu.memory_space<vmem>>, %arg7: memref<128x128xf32, #tpu.memory_space<vmem>>) attributes {dimension_semantics = [#tpu.dimension_semantics<parallel>, #tpu.dimension_semantics<arbitrary>], iteration_bounds = array<i64: 1, 1>, scalar_prefetch = 0 : i64, scratch_operands = 1 : i64, tpu.core_type = #tpu.core_type<tc>, window_params = [{transform_indices = @transform_0, window_bounds = array<i64: 128, 128>}, {transform_indices = @transform_1, window_bounds = array<i64: 128, 128>}, {pipeline_mode = #tpu.pipeline_mode<synchronous>, transform_indices = @transform_2, window_bounds = array<i64: 128, 128>}, {pipeline_mode = #tpu.pipeline_mode<synchronous>, transform_indices = @transform_3, window_bounds = array<i64: 1, 128>}, {transform_indices = @transform_4, window_bounds = array<i64: 128, 128>}]} {
    %c0_i32 = arith.constant 0 : i32
    %0 = arith.cmpi eq, %arg1, %c0_i32 : i32
    %1 = arith.extui %0 : i1 to i32
    %c0_i32_0 = arith.constant 0 : i32
    %2 = arith.cmpi ne, %1, %c0_i32_0 : i32
    scf.if %2 {
      %cst_10 = arith.constant 0.000000e+00 : f32
      %13 = vector.broadcast %cst_10 : f32 to vector<128x128xf32>
      %c0_11 = arith.constant 0 : index
      %c0_12 = arith.constant 0 : index
      %14 = vector.load %arg7[%c0_11, %c0_12] : memref<128x128xf32, #tpu.memory_space<vmem>>, vector<128x128xf32>
      tpu.vector_store %arg7[%c0_11, %c0_12], %13 {strides = array<i32>} : memref<128x128xf32, #tpu.memory_space<vmem>>, vector<128x128xf32>,
    } else {
    }
    %c0 = arith.constant 0 : index
    %c0_1 = arith.constant 0 : index
    %3 = vector.load %arg7[%c0, %c0_1] : memref<128x128xf32, #tpu.memory_space<vmem>>, vector<128x128xf32>
    %c0_2 = arith.constant 0 : index
    %c0_3 = arith.constant 0 : index
    %4 = vector.load %arg2[%c0_2, %c0_3] : memref<128x128xi8, #tpu.memory_space<vmem>>, vector<128x128xi8>
    %5 = arith.sitofp %4 : vector<128x128xi8> to vector<128x128xbf16>
    %c0_4 = arith.constant 0 : index
    %c0_5 = arith.constant 0 : index
    %6 = vector.load %arg3[%c0_4, %c0_5] : memref<128x128xbf16, #tpu.memory_space<vmem>>, vector<128x128xbf16>
    %cst = arith.constant dense<0.000000e+00> : vector<128x128xf32>
    %7 = tpu.matmul %5, %6, %cst {dimension_numbers = #tpu.dot_dimension_numbers<[1], [0], [0], [1], [0, 0, 1, 1], [], []>} : vector<128x128xbf16>, vector<128x128xbf16>, vector<128x128xf32> -> vector<128x128xf32>
    %8 = arith.addf %3, %7 : vector<128x128xf32>
    %c0_6 = arith.constant 0 : index
    %c0_7 = arith.constant 0 : index
    %9 = vector.load %arg7[%c0_6, %c0_7] : memref<128x128xf32, #tpu.memory_space<vmem>>, vector<128x128xf32>
    tpu.vector_store %arg7[%c0_6, %c0_7], %8 {strides = array<i32>} : memref<128x128xf32, #tpu.memory_space<vmem>>, vector<128x128xf32>,
    %c0_i32_8 = arith.constant 0 : i32
    %10 = arith.cmpi eq, %arg1, %c0_i32_8 : i32
    %11 = arith.extui %10 : i1 to i32
    %c0_i32_9 = arith.constant 0 : i32
    %12 = arith.cmpi ne, %11, %c0_i32_9 : i32
    scf.if %12 {
      %c0_10 = arith.constant 0 : index
      %c0_11 = arith.constant 0 : index
      %13 = vector.load %arg7[%c0_10, %c0_11] : memref<128x128xf32, #tpu.memory_space<vmem>>, vector<128x128xf32>
      %14 = arith.truncf %13 : vector<128x128xf32> to vector<128x128xbf16>
      %c0_12 = arith.constant 0 : index
      %c0_13 = arith.constant 0 : index
      %15 = vector.load %arg4[%c0_12, %c0_13] : memref<128x128xbf16, #tpu.memory_space<vmem>>, vector<128x128xbf16>
      %cst_14 = arith.constant dense<0.000000e+00> : vector<128x128xf32>
      %16 = tpu.matmul %14, %15, %cst_14 {dimension_numbers = #tpu.dot_dimension_numbers<[1], [0], [0], [1], [0, 0, 1, 1], [], []>} : vector<128x128xbf16>, vector<128x128xbf16>, vector<128x128xf32> -> vector<128x128xf32>
      %c0_15 = arith.constant 0 : index
      %c0_16 = arith.constant 0 : index
      %17 = vector.load %arg5[%c0_15, %c0_16] : memref<1x128xf32, #tpu.memory_space<vmem>>, vector<1x128xf32>
      %18 = vector.broadcast %17 : vector<1x128xf32> to vector<128x128xf32>
      %19 = arith.addf %16, %18 : vector<128x128xf32>
      %cst_17 = arith.constant dense<0xFF800000> : vector<128xf32>
      %20 = vector.multi_reduction <maximumf>, %19, %cst_17 [1] : vector<128x128xf32> to vector<128xf32>
      %21 = vector.shape_cast %20 : vector<128xf32> to vector<128x1xf32>
      %22 = vector.broadcast %21 : vector<128x1xf32> to vector<128x128xf32>
      %23 = arith.subf %19, %22 : vector<128x128xf32>
      %24 = math.exp %23 : vector<128x128xf32>
      %cst_18 = arith.constant dense<0.000000e+00> : vector<128xf32>
      %25 = vector.multi_reduction <add>, %24, %cst_18 [1] : vector<128x128xf32> to vector<128xf32>
      %26 = vector.shape_cast %25 : vector<128xf32> to vector<128x1xf32>
      %27 = math.log %26 : vector<128x1xf32>
      %28 = vector.broadcast %27 : vector<128x1xf32> to vector<128x128xf32>
      %29 = arith.subf %23, %28 : vector<128x128xf32>
      %c0_19 = arith.constant 0 : index
      %c0_20 = arith.constant 0 : index
      %30 = vector.load %arg6[%c0_19, %c0_20] : memref<128x128xf32, #tpu.memory_space<vmem>>, vector<128x128xf32>
      tpu.vector_store %arg6[%c0_19, %c0_20], %29 {strides = array<i32>} : memref<128x128xf32, #tpu.memory_space<vmem>>, vector<128x128xf32>,
    } else {
    }
    return
  }
  func.func @transform_0(%arg0: i32, %arg1: i32) -> (i32, i32) {
    %c0_i32 = arith.constant 0 : i32
    return %arg0, %arg1 : i32, i32
  }
  func.func @transform_1(%arg0: i32, %arg1: i32) -> (i32, i32) {
    %c0_i32 = arith.constant 0 : i32
    %c0_i32_0 = arith.constant 0 : i32
    return %arg1, %c0_i32 : i32, i32
  }
  func.func @transform_2(%arg0: i32, %arg1: i32) -> (i32, i32) {
    %c0_i32 = arith.constant 0 : i32
    %c0_i32_0 = arith.constant 0 : i32
    %c0_i32_1 = arith.constant 0 : i32
    return %c0_i32, %c0_i32_0 : i32, i32
  }
  func.func @transform_3(%arg0: i32, %arg1: i32) -> (i32, i32) {
    %c0_i32 = arith.constant 0 : i32
    %c0_i32_0 = arith.constant 0 : i32
    %c0_i32_1 = arith.constant 0 : i32
    return %c0_i32, %c0_i32_0 : i32, i32
  }
  func.func @transform_4(%arg0: i32, %arg1: i32) -> (i32, i32) {
    %c0_i32 = arith.constant 0 : i32
    %c0_i32_0 = arith.constant 0 : i32
    return %arg0, %c0_i32 : i32, i32
  }
}

</mosaic_0001>

<llo_original>
// kernel: gcn_forward.3
$region0: #{gcn_forward.3}
  #allocation0 [shape = 'u32[]', space=smem, size = 0x4, offset = 0x4, fixed_abs, tag = 'smem constant byte address 0x4 - core index']
  #allocation1 [shape = 'u32[72,128]{1,0:T(1,128)}', space=vmem, size = 0x9000, scoped, tag = 'internal scratch']
  #allocation2 [shape = 'f32[128,128]{1,0:T(8,128)}', space=vmem, size = 0x10000, scoped, tag = 'scratch operand']
  %s0 = inlined_call_operand.vmem [shape: s8[128,128], index: 0, kind: input, shape index: {}]
  %s1 = inlined_call_operand.vmem [shape: bf16[128,128], index: 1, kind: input, shape index: {}]
  %s2 = inlined_call_operand.vmem [shape: bf16[128,128], index: 2, kind: input, shape index: {}]
  %s3 = inlined_call_operand.vmem [shape: f32[1,128], index: 3, kind: input, shape index: {}]
  %s4 = inlined_call_operand.vmem [shape: f32[128,128], index: 4, kind: output, shape index: {}]
  %s5 = sld [smem:[#allocation0]]
  $region34: #{gcn_forward.3} parent=0
    _
  %s7 = ssub.s32 1, %s5
  %s8 = scalar_select 0, %s7, %s5
  // Predicated region
  $region2: #{gcn_forward.3} parent=0 // pred_check
    _
  $region3: #{gcn_forward.3} parent=0 // pred_check_branch
    %10 = sbr.rel (0) target = $region5
  $region4: #{gcn_forward.3} parent=0 // pred_region
    _
  $region5: #{gcn_forward.3} parent=0 // pred_fallthru
    _
  // Predicated region
  $region6: #{gcn_forward.3} parent=0 // pred_check
    _
  $region7: #{gcn_forward.3} parent=0 // pred_check_branch
    %12 = sbr.rel (0) target = $region9
  $region8: #{gcn_forward.3} parent=0 // pred_region
    _
  $region9: #{gcn_forward.3} parent=0 // pred_fallthru
    _
  // Predicated region
  $region10: #{gcn_forward.3} parent=0 // pred_check
    _
  $region11: #{gcn_forward.3} parent=0 // pred_check_branch
    %14 = sbr.rel (0) target = $region13
  $region12: #{gcn_forward.3} parent=0 // pred_region
    _
  $region13: #{gcn_forward.3} parent=0 // pred_fallthru
    _
  // Predicated region
  $region14: #{gcn_forward.3} parent=0 // pred_check
    _
  $region15: #{gcn_forward.3} parent=0 // pred_check_branch
    %16 = sbr.rel (0) target = $region17
  $region16: #{gcn_forward.3} parent=0 // pred_region
    _
  $region17: #{gcn_forward.3} parent=0 // pred_fallthru
    _
  %p17 = scmp.eq.s32.totalorder 0, 0
  // Predicated region
  $region18: #{gcn_forward.3} parent=0 // pred_check
    %p18 = pneg %p17
  $region19: #{gcn_forward.3} parent=0 // pred_check_branch
    %20 = sbr.rel (%p18) target = $region21
  $region20: #{gcn_forward.3} parent=0 // pred_region
    %21 = vst [vmem:[#allocation2] sm:$0xff] 0.0
    %22 = vst [vmem:[#allocation2 + $0x8] sm:$0xff] 0.0
    %23 = vst [vmem:[#allocation2 + $0x10] sm:$0xff] 0.0
    %24 = vst [vmem:[#allocation2 + $0x18] sm:$0xff] 0.0
    %25 = vst [vmem:[#allocation2 + $0x20] sm:$0xff] 0.0
    %26 = vst [vmem:[#allocation2 + $0x28] sm:$0xff] 0.0
    %27 = vst [vmem:[#allocation2 + $0x30] sm:$0xff] 0.0
    %28 = vst [vmem:[#allocation2 + $0x38] sm:$0xff] 0.0
    %29 = vst [vmem:[#allocation2 + $0x40] sm:$0xff] 0.0
    %30 = vst [vmem:[#allocation2 + $0x48] sm:$0xff] 0.0
    %31 = vst [vmem:[#allocation2 + $0x50] sm:$0xff] 0.0
    %32 = vst [vmem:[#allocation2 + $0x58] sm:$0xff] 0.0
    %33 = vst [vmem:[#allocation2 + $0x60] sm:$0xff] 0.0
    %34 = vst [vmem:[#allocation2 + $0x68] sm:$0xff] 0.0
    %35 = vst [vmem:[#allocation2 + $0x70] sm:$0xff] 0.0
    %36 = vst [vmem:[#allocation2 + $0x78] sm:$0xff] 0.0
  $region21: #{gcn_forward.3} parent=0 // pred_fallthru
    _
  %v37 = vld [vmem:[#allocation2] sm:$0xff]
  %v38 = vld [vmem:[#allocation2 + $0x8] sm:$0xff]
  %v39 = vld [vmem:[#allocation2 + $0x10] sm:$0xff]
  %v40 = vld [vmem:[#allocation2 + $0x18] sm:$0xff]
  %v41 = vld [vmem:[#allocation2 + $0x20] sm:$0xff]
  %v42 = vld [vmem:[#allocation2 + $0x28] sm:$0xff]
  %v43 = vld [vmem:[#allocation2 + $0x30] sm:$0xff]
  %v44 = vld [vmem:[#allocation2 + $0x38] sm:$0xff]
  %v45 = vld [vmem:[#allocation2 + $0x40] sm:$0xff]
  %v46 = vld [vmem:[#allocation2 + $0x48] sm:$0xff]
  %v47 = vld [vmem:[#allocation2 + $0x50] sm:$0xff]
  %v48 = vld [vmem:[#allocation2 + $0x58] sm:$0xff]
  %v49 = vld [vmem:[#allocation2 + $0x60] sm:$0xff]
  %v50 = vld [vmem:[#allocation2 + $0x68] sm:$0xff]
  %v51 = vld [vmem:[#allocation2 + $0x70] sm:$0xff]
  %v52 = vld [vmem:[#allocation2 + $0x78] sm:$0xff]
  %v53 = vld [vmem:[%s0] sm:$0xff]
  %v54 = vld [vmem:[%s0 + $0x8] sm:$0xff]
  %v55 = vld [vmem:[%s0 + $0x10] sm:$0xff]
  %v56 = vld [vmem:[%s0 + $0x18] sm:$0xff]
  %v57 = vunpack.c.0.s8 %v53
  %v58 = vunpack.c.1.s8 %v53
  %v59 = vunpack.c.2.s8 %v53
  %v60 = vunpack.c.3.s8 %v53
  %v61 = vunpack.c.0.s8 %v54
  %v62 = vunpack.c.1.s8 %v54
  %v63 = vunpack.c.2.s8 %v54
  %v64 = vunpack.c.3.s8 %v54
  %v65 = vunpack.c.0.s8 %v55
  %v66 = vunpack.c.1.s8 %v55
  %v67 = vunpack.c.2.s8 %v55
  %v68 = vunpack.c.3.s8 %v55
  %v69 = vunpack.c.0.s8 %v56
  %v70 = vunpack.c.1.s8 %v56
  %v71 = vunpack.c.2.s8 %v56
  %v72 = vunpack.c.3.s8 %v56
  %v73 = vcvt.s32.f32 %v57
  %v74 = vcvt.s32.f32 %v58
  %v75 = vcvt.s32.f32 %v59
  %v76 = vcvt.s32.f32 %v60
  %v77 = vcvt.s32.f32 %v61
  %v78 = vcvt.s32.f32 %v62
  %v79 = vcvt.s32.f32 %v63
  %v80 = vcvt.s32.f32 %v64
  %v81 = vcvt.s32.f32 %v65
  %v82 = vcvt.s32.f32 %v66
  %v83 = vcvt.s32.f32 %v67
  %v84 = vcvt.s32.f32 %v68
  %v85 = vcvt.s32.f32 %v69
  %v86 = vcvt.s32.f32 %v70
  %v87 = vcvt.s32.f32 %v71
  %v88 = vcvt.s32.f32 %v72
  %v89 = vpack.c.bf16 %v74, %v73
  %v90 = vpack.c.bf16 %v76, %v75
  %v91 = vpack.c.bf16 %v78, %v77
  %v92 = vpack.c.bf16 %v80, %v79
  %v93 = vpack.c.bf16 %v82, %v81
  %v94 = vpack.c.bf16 %v84, %v83
  %v95 = vpack.c.bf16 %v86, %v85
  %v96 = vpack.c.bf16 %v88, %v87
  %v97 = vld [vmem:[%s1] sm:$0xf]
  %v98 = vld [vmem:[%s1 + $0x4] sm:$0xf]
  %v99 = vld [vmem:[%s1 + $0x8] sm:$0xf]
  %v100 = vld [vmem:[%s1 + $0xc] sm:$0xf]
  %v101 = vld [vmem:[%s1 + $0x10] sm:$0xf]
  %v102 = vld [vmem:[%s1 + $0x14] sm:$0xf]
  %v103 = vld [vmem:[%s1 + $0x18] sm:$0xf]
  %v104 = vld [vmem:[%s1 + $0x1c] sm:$0xf]
  %v105 = vld [vmem:[%s1 + $0x20] sm:$0xf]
  %v106 = vld [vmem:[%s1 + $0x24] sm:$0xf]
  %v107 = vld [vmem:[%s1 + $0x28] sm:$0xf]
  %v108 = vld [vmem:[%s1 + $0x2c] sm:$0xf]
  %v109 = vld [vmem:[%s1 + $0x30] sm:$0xf]
  %v110 = vld [vmem:[%s1 + $0x34] sm:$0xf]
  %v111 = vld [vmem:[%s1 + $0x38] sm:$0xf]
  %v112 = vld [vmem:[%s1 + $0x3c] sm:$0xf]
  %v129 = vunpack.c.l.b16 %v97
  %v130 = vunpack.c.l.b16 %v98
  %v131 = vunpack.c.l.b16 %v99
  %v132 = vunpack.c.l.b16 %v100
  %v133 = vunpack.c.l.b16 %v101
  %v134 = vunpack.c.l.b16 %v102
  %v135 = vunpack.c.l.b16 %v103
  %v136 = vunpack.c.l.b16 %v104
  %v137 = vunpack.c.l.b16 %v105
  %v138 = vunpack.c.l.b16 %v106
  %v139 = vunpack.c.l.b16 %v107
  %v140 = vunpack.c.l.b16 %v108
  %v141 = vunpack.c.l.b16 %v109
  %v142 = vunpack.c.l.b16 %v110
  %v143 = vunpack.c.l.b16 %v111
  %v144 = vunpack.c.l.b16 %v112
  %v145 = vpack.c.b16 %v130, %v129
  %v146 = vpack.c.b16 %v132, %v131
  %v147 = vpack.c.b16 %v134, %v133
  %v148 = vpack.c.b16 %v136, %v135
  %v149 = vpack.c.b16 %v138, %v137
  %v150 = vpack.c.b16 %v140, %v139
  %v151 = vpack.c.b16 %v142, %v141
  %v152 = vpack.c.b16 %v144, %v143
  %161 = vmatpush.bf16.msra.mxu0 %v152
  %162 = vmatpush.bf16.msra.mxu0 %v151
  %163 = vmatpush.bf16.msra.mxu0 %v150
  %164 = vmatpush.bf16.msra.mxu0 %v149
  %165 = vmatpush.bf16.msra.mxu0 %v148
  %166 = vmatpush.bf16.msra.mxu0 %v147
  %167 = vmatpush.bf16.msra.mxu0 %v146
  %168 = vmatpush.bf16.msra.mxu0 %v145
  %169 = vmatmul.bf16.gmra.mxu0 %v89
  %v170 = vpop.f32.mrf.mxu0
  %v171 = vadd.f32 0.0, %v170
  %v172 = vpop.f32.mrf.mxu0
  %v173 = vadd.f32 0.0, %v172
  %174 = vmatmul.bf16.gmra.mxu0 %v90
  %v175 = vpop.f32.mrf.mxu0
  %v176 = vadd.f32 0.0, %v175
  %v177 = vpop.f32.mrf.mxu0
  %v178 = vadd.f32 0.0, %v177
  %179 = vmatmul.bf16.gmra.mxu0 %v91
  %v180 = vpop.f32.mrf.mxu0
  %v181 = vadd.f32 0.0, %v180
  %v182 = vpop.f32.mrf.mxu0
  %v183 = vadd.f32 0.0, %v182
  %184 = vmatmul.bf16.gmra.mxu0 %v92
  %v185 = vpop.f32.mrf.mxu0
  %v186 = vadd.f32 0.0, %v185
  %v187 = vpop.f32.mrf.mxu0
  %v188 = vadd.f32 0.0, %v187
  %189 = vmatmul.bf16.gmra.mxu0 %v93
  %v190 = vpop.f32.mrf.mxu0
  %v191 = vadd.f32 0.0, %v190
  %v192 = vpop.f32.mrf.mxu0
  %v193 = vadd.f32 0.0, %v192
  %194 = vmatmul.bf16.gmra.mxu0 %v94
  %v195 = vpop.f32.mrf.mxu0
  %v196 = vadd.f32 0.0, %v195
  %v197 = vpop.f32.mrf.mxu0
  %v198 = vadd.f32 0.0, %v197
  %199 = vmatmul.bf16.gmra.mxu0 %v95
  %v200 = vpop.f32.mrf.mxu0
  %v201 = vadd.f32 0.0, %v200
  %v202 = vpop.f32.mrf.mxu0
  %v203 = vadd.f32 0.0, %v202
  %204 = vmatmul.bf16.gmra.mxu0 %v96
  %v205 = vpop.f32.mrf.mxu0
  %v206 = vadd.f32 0.0, %v205
  %v207 = vpop.f32.mrf.mxu0
  %v208 = vadd.f32 0.0, %v207
  %209 = vdwg.mxu0
  %v210 = vadd.f32 %v37, %v171
  %v211 = vadd.f32 %v38, %v173
  %v212 = vadd.f32 %v39, %v176
  %v213 = vadd.f32 %v40, %v178
  %v214 = vadd.f32 %v41, %v181
  %v215 = vadd.f32 %v42, %v183
  %v216 = vadd.f32 %v43, %v186
  %v217 = vadd.f32 %v44, %v188
  %v218 = vadd.f32 %v45, %v191
  %v219 = vadd.f32 %v46, %v193
  %v220 = vadd.f32 %v47, %v196
  %v221 = vadd.f32 %v48, %v198
  %v222 = vadd.f32 %v49, %v201
  %v223 = vadd.f32 %v50, %v203
  %v224 = vadd.f32 %v51, %v206
  %v225 = vadd.f32 %v52, %v208
  %226 = vst [vmem:[#allocation2] sm:$0xff] %v210
  %227 = vst [vmem:[#allocation2 + $0x8] sm:$0xff] %v211
  %228 = vst [vmem:[#allocation2 + $0x10] sm:$0xff] %v212
  %229 = vst [vmem:[#allocation2 + $0x18] sm:$0xff] %v213
  %230 = vst [vmem:[#allocation2 + $0x20] sm:$0xff] %v214
  %231 = vst [vmem:[#allocation2 + $0x28] sm:$0xff] %v215
  %232 = vst [vmem:[#allocation2 + $0x30] sm:$0xff] %v216
  %233 = vst [vmem:[#allocation2 + $0x38] sm:$0xff] %v217
  %234 = vst [vmem:[#allocation2 + $0x40] sm:$0xff] %v218
  %235 = vst [vmem:[#allocation2 + $0x48] sm:$0xff] %v219
  %236 = vst [vmem:[#allocation2 + $0x50] sm:$0xff] %v220
  %237 = vst [vmem:[#allocation2 + $0x58] sm:$0xff] %v221
  %238 = vst [vmem:[#allocation2 + $0x60] sm:$0xff] %v222
  %239 = vst [vmem:[#allocation2 + $0x68] sm:$0xff] %v223
  %240 = vst [vmem:[#allocation2 + $0x70] sm:$0xff] %v224
  %241 = vst [vmem:[#allocation2 + $0x78] sm:$0xff] %v225
  // Predicated region
  $region22: #{gcn_forward.3} parent=0 // pred_check
    %p242 = pneg %p17
  $region23: #{gcn_forward.3} parent=0 // pred_check_branch
    %244 = sbr.rel (%p242) target = $region25
  $region24: #{gcn_forward.3} parent=0 // pred_region
    %v245 = vld [vmem:[#allocation2] sm:$0xff]
    %v246 = vld [vmem:[#allocation2 + $0x8] sm:$0xff]
    %v247 = vld [vmem:[#allocation2 + $0x10] sm:$0xff]
    %v248 = vld [vmem:[#allocation2 + $0x18] sm:$0xff]
    %v249 = vld [vmem:[#allocation2 + $0x20] sm:$0xff]
    %v250 = vld [vmem:[#allocation2 + $0x28] sm:$0xff]
    %v251 = vld [vmem:[#allocation2 + $0x30] sm:$0xff]
    %v252 = vld [vmem:[#allocation2 + $0x38] sm:$0xff]
    %v253 = vld [vmem:[#allocation2 + $0x40] sm:$0xff]
    %v254 = vld [vmem:[#allocation2 + $0x48] sm:$0xff]
    %v255 = vld [vmem:[#allocation2 + $0x50] sm:$0xff]
    %v256 = vld [vmem:[#allocation2 + $0x58] sm:$0xff]
    %v257 = vld [vmem:[#allocation2 + $0x60] sm:$0xff]
    %v258 = vld [vmem:[#allocation2 + $0x68] sm:$0xff]
    %v259 = vld [vmem:[#allocation2 + $0x70] sm:$0xff]
    %v260 = vld [vmem:[#allocation2 + $0x78] sm:$0xff]
    %v261 = vpack.c.bf16 %v246, %v245
    %v262 = vpack.c.bf16 %v248, %v247
    %v263 = vpack.c.bf16 %v250, %v249
    %v264 = vpack.c.bf16 %v252, %v251
    %v265 = vpack.c.bf16 %v254, %v253
    %v266 = vpack.c.bf16 %v256, %v255
    %v267 = vpack.c.bf16 %v258, %v257
    %v268 = vpack.c.bf16 %v260, %v259
    %v269 = vld [vmem:[%s2] sm:$0xf]
    %v270 = vld [vmem:[%s2 + $0x4] sm:$0xf]
    %v271 = vld [vmem:[%s2 + $0x8] sm:$0xf]
    %v272 = vld [vmem:[%s2 + $0xc] sm:$0xf]
    %v273 = vld [vmem:[%s2 + $0x10] sm:$0xf]
    %v274 = vld [vmem:[%s2 + $0x14] sm:$0xf]
    %v275 = vld [vmem:[%s2 + $0x18] sm:$0xf]
    %v276 = vld [vmem:[%s2 + $0x1c] sm:$0xf]
    %v277 = vld [vmem:[%s2 + $0x20] sm:$0xf]
    %v278 = vld [vmem:[%s2 + $0x24] sm:$0xf]
    %v279 = vld [vmem:[%s2 + $0x28] sm:$0xf]
    %v280 = vld [vmem:[%s2 + $0x2c] sm:$0xf]
    %v281 = vld [vmem:[%s2 + $0x30] sm:$0xf]
    %v282 = vld [vmem:[%s2 + $0x34] sm:$0xf]
    %v283 = vld [vmem:[%s2 + $0x38] sm:$0xf]
    %v284 = vld [vmem:[%s2 + $0x3c] sm:$0xf]
    %v285 = vld [vmem:[%s3] sm:$0x1]
    %v287 = vperm.slane %v285, 0
    %v305 = vunpack.c.l.b16 %v269
    %v306 = vunpack.c.l.b16 %v270
    %v307 = vunpack.c.l.b16 %v271
    %v308 = vunpack.c.l.b16 %v272
    %v309 = vunpack.c.l.b16 %v273
    %v310 = vunpack.c.l.b16 %v274
    %v311 = vunpack.c.l.b16 %v275
    %v312 = vunpack.c.l.b16 %v276
    %v313 = vunpack.c.l.b16 %v277
    %v314 = vunpack.c.l.b16 %v278
    %v315 = vunpack.c.l.b16 %v279
    %v316 = vunpack.c.l.b16 %v280
    %v317 = vunpack.c.l.b16 %v281
    %v318 = vunpack.c.l.b16 %v282
    %v319 = vunpack.c.l.b16 %v283
    %v320 = vunpack.c.l.b16 %v284
    %v321 = vpack.c.b16 %v306, %v305
    %v322 = vpack.c.b16 %v308, %v307
    %v323 = vpack.c.b16 %v310, %v309
    %v324 = vpack.c.b16 %v312, %v311
    %v325 = vpack.c.b16 %v314, %v313
    %v326 = vpack.c.b16 %v316, %v315
    %v327 = vpack.c.b16 %v318, %v317
    %v328 = vpack.c.b16 %v320, %v319
    %337 = vmatpush.bf16.msra.mxu0 %v328
    %338 = vmatpush.bf16.msra.mxu0 %v327
    %339 = vmatpush.bf16.msra.mxu0 %v326
    %340 = vmatpush.bf16.msra.mxu0 %v325
    %341 = vmatpush.bf16.msra.mxu0 %v324
    %342 = vmatpush.bf16.msra.mxu0 %v323
    %343 = vmatpush.bf16.msra.mxu0 %v322
    %344 = vmatpush.bf16.msra.mxu0 %v321
    %345 = vmatmul.bf16.gmra.mxu0 %v261
    %v346 = vpop.f32.mrf.mxu0
    %v347 = vadd.f32 %v287, %v346
    %v348 = vpop.f32.mrf.mxu0
    %v349 = vadd.f32 %v287, %v348
    %350 = vmatmul.bf16.gmra.mxu0 %v262
    %v351 = vpop.f32.mrf.mxu0
    %v352 = vadd.f32 %v287, %v351
    %v353 = vpop.f32.mrf.mxu0
    %v354 = vadd.f32 %v287, %v353
    %355 = vmatmul.bf16.gmra.mxu0 %v263
    %v356 = vpop.f32.mrf.mxu0
    %v357 = vadd.f32 %v287, %v356
    %v358 = vpop.f32.mrf.mxu0
    %v359 = vadd.f32 %v287, %v358
    %360 = vmatmul.bf16.gmra.mxu0 %v264
    %v361 = vpop.f32.mrf.mxu0
    %v362 = vadd.f32 %v287, %v361
    %v363 = vpop.f32.mrf.mxu0
    %v364 = vadd.f32 %v287, %v363
    %365 = vmatmul.bf16.gmra.mxu0 %v265
    %v366 = vpop.f32.mrf.mxu0
    %v367 = vadd.f32 %v287, %v366
    %v368 = vpop.f32.mrf.mxu0
    %v369 = vadd.f32 %v287, %v368
    %370 = vmatmul.bf16.gmra.mxu0 %v266
    %v371 = vpop.f32.mrf.mxu0
    %v372 = vadd.f32 %v287, %v371
    %v373 = vpop.f32.mrf.mxu0
    %v374 = vadd.f32 %v287, %v373
    %375 = vmatmul.bf16.gmra.mxu0 %v267
    %v376 = vpop.f32.mrf.mxu0
    %v377 = vadd.f32 %v287, %v376
    %v378 = vpop.f32.mrf.mxu0
    %v379 = vadd.f32 %v287, %v378
    %380 = vmatmul.bf16.gmra.mxu0 %v268
    %v381 = vpop.f32.mrf.mxu0
    %v382 = vadd.f32 %v287, %v381
    %v383 = vpop.f32.mrf.mxu0
    %v384 = vadd.f32 %v287, %v383
    %385 = vdwg.mxu0
    %386 = vmax.xlane.f32.xlu0 %v347
    %v387 = vpop.xlane.xlu0 %386
    %388 = vmax.xlane.f32.xlu0 %v349
    %v389 = vpop.xlane.xlu0 %388
    %390 = vmax.xlane.f32.xlu0 %v352
    %v391 = vpop.xlane.xlu0 %390
    %392 = vmax.xlane.f32.xlu0 %v354
    %v393 = vpop.xlane.xlu0 %392
    %394 = vmax.xlane.f32.xlu0 %v357
    %v395 = vpop.xlane.xlu0 %394
    %396 = vmax.xlane.f32.xlu0 %v359
    %v397 = vpop.xlane.xlu0 %396
    %398 = vmax.xlane.f32.xlu0 %v362
    %v399 = vpop.xlane.xlu0 %398
    %400 = vmax.xlane.f32.xlu0 %v364
    %v401 = vpop.xlane.xlu0 %400
    %402 = vmax.xlane.f32.xlu0 %v367
    %v403 = vpop.xlane.xlu0 %402
    %404 = vmax.xlane.f32.xlu0 %v369
    %v405 = vpop.xlane.xlu0 %404
    %406 = vmax.xlane.f32.xlu0 %v372
    %v407 = vpop.xlane.xlu0 %406
    %408 = vmax.xlane.f32.xlu0 %v374
    %v409 = vpop.xlane.xlu0 %408
    %410 = vmax.xlane.f32.xlu0 %v377
    %v411 = vpop.xlane.xlu0 %410
    %412 = vmax.xlane.f32.xlu0 %v379
    %v413 = vpop.xlane.xlu0 %412
    %414 = vmax.xlane.f32.xlu0 %v382
    %v415 = vpop.xlane.xlu0 %414
    %416 = vmax.xlane.f32.xlu0 %v384
    %v417 = vpop.xlane.xlu0 %416
    %v418 = vsub.f32 %v347, %v387
    %v419 = vsub.f32 %v349, %v389
    %v420 = vsub.f32 %v352, %v391
    %v421 = vsub.f32 %v354, %v393
    %v422 = vsub.f32 %v357, %v395
    %v423 = vsub.f32 %v359, %v397
    %v424 = vsub.f32 %v362, %v399
    %v425 = vsub.f32 %v364, %v401
    %v426 = vsub.f32 %v367, %v403
    %v427 = vsub.f32 %v369, %v405
    %v428 = vsub.f32 %v372, %v407
    %v429 = vsub.f32 %v374, %v409
    %v430 = vsub.f32 %v377, %v411
    %v431 = vsub.f32 %v379, %v413
    %v432 = vsub.f32 %v382, %v415
    %v433 = vsub.f32 %v384, %v417
    %v434 = vmul.f32 %v418, 1.442695
    %v435 = vpow.pop %v434
    %v436 = vmul.f32 %v419, 1.442695
    %v437 = vpow.pop %v436
    %v438 = vmul.f32 %v420, 1.442695
    %v439 = vpow.pop %v438
    %v440 = vmul.f32 %v421, 1.442695
    %v441 = vpow.pop %v440
    %v442 = vmul.f32 %v422, 1.442695
    %v443 = vpow.pop %v442
    %v444 = vmul.f32 %v423, 1.442695
    %v445 = vpow.pop %v444
    %v446 = vmul.f32 %v424, 1.442695
    %v447 = vpow.pop %v446
    %v448 = vmul.f32 %v425, 1.442695
    %v449 = vpow.pop %v448
    %v450 = vmul.f32 %v426, 1.442695
    %v451 = vpow.pop %v450
    %v452 = vmul.f32 %v427, 1.442695
    %v453 = vpow.pop %v452
    %v454 = vmul.f32 %v428, 1.442695
    %v455 = vpow.pop %v454
    %v456 = vmul.f32 %v429, 1.442695
    %v457 = vpow.pop %v456
    %v458 = vmul.f32 %v430, 1.442695
    %v459 = vpow.pop %v458
    %v460 = vmul.f32 %v431, 1.442695
    %v461 = vpow.pop %v460
    %v462 = vmul.f32 %v432, 1.442695
    %v463 = vpow.pop %v462
    %v464 = vmul.f32 %v433, 1.442695
    %v465 = vpow.pop %v464
    %466 = vadd.xlane.f32.xlu0 %v435
    %v467 = vpop.xlane.xlu0 %466
    %468 = vadd.xlane.f32.xlu0 %v437
    %v469 = vpop.xlane.xlu0 %468
    %470 = vadd.xlane.f32.xlu0 %v439
    %v471 = vpop.xlane.xlu0 %470
    %472 = vadd.xlane.f32.xlu0 %v441
    %v473 = vpop.xlane.xlu0 %472
    %474 = vadd.xlane.f32.xlu0 %v443
    %v475 = vpop.xlane.xlu0 %474
    %476 = vadd.xlane.f32.xlu0 %v445
    %v477 = vpop.xlane.xlu0 %476
    %478 = vadd.xlane.f32.xlu0 %v447
    %v479 = vpop.xlane.xlu0 %478
    %480 = vadd.xlane.f32.xlu0 %v449
    %v481 = vpop.xlane.xlu0 %480
    %482 = vadd.xlane.f32.xlu0 %v451
    %v483 = vpop.xlane.xlu0 %482
    %484 = vadd.xlane.f32.xlu0 %v453
    %v485 = vpop.xlane.xlu0 %484
    %486 = vadd.xlane.f32.xlu0 %v455
    %v487 = vpop.xlane.xlu0 %486
    %488 = vadd.xlane.f32.xlu0 %v457
    %v489 = vpop.xlane.xlu0 %488
    %490 = vadd.xlane.f32.xlu0 %v459
    %v491 = vpop.xlane.xlu0 %490
    %492 = vadd.xlane.f32.xlu0 %v461
    %v493 = vpop.xlane.xlu0 %492
    %494 = vadd.xlane.f32.xlu0 %v463
    %v495 = vpop.xlane.xlu0 %494
    %496 = vadd.xlane.f32.xlu0 %v465
    %v497 = vpop.xlane.xlu0 %496
    %v498 = vlog2.pop %v467
    %v499 = vmul.f32 %v498, 0.6931472
    %v500 = vlog2.pop %v469
    %v501 = vmul.f32 %v500, 0.6931472
    %v502 = vlog2.pop %v471
    %v503 = vmul.f32 %v502, 0.6931472
    %v504 = vlog2.pop %v473
    %v505 = vmul.f32 %v504, 0.6931472
    %v506 = vlog2.pop %v475
    %v507 = vmul.f32 %v506, 0.6931472
    %v508 = vlog2.pop %v477
    %v509 = vmul.f32 %v508, 0.6931472
    %v510 = vlog2.pop %v479
    %v511 = vmul.f32 %v510, 0.6931472
    %v512 = vlog2.pop %v481
    %v513 = vmul.f32 %v512, 0.6931472
    %v514 = vlog2.pop %v483
    %v515 = vmul.f32 %v514, 0.6931472
    %v516 = vlog2.pop %v485
    %v517 = vmul.f32 %v516, 0.6931472
    %v518 = vlog2.pop %v487
    %v519 = vmul.f32 %v518, 0.6931472
    %v520 = vlog2.pop %v489
    %v521 = vmul.f32 %v520, 0.6931472
    %v522 = vlog2.pop %v491
    %v523 = vmul.f32 %v522, 0.6931472
    %v524 = vlog2.pop %v493
    %v525 = vmul.f32 %v524, 0.6931472
    %v526 = vlog2.pop %v495
    %v527 = vmul.f32 %v526, 0.6931472
    %v528 = vlog2.pop %v497
    %v529 = vmul.f32 %v528, 0.6931472
    %v530 = vsub.f32 %v418, %v499
    %v531 = vsub.f32 %v419, %v501
    %v532 = vsub.f32 %v420, %v503
    %v533 = vsub.f32 %v421, %v505
    %v534 = vsub.f32 %v422, %v507
    %v535 = vsub.f32 %v423, %v509
    %v536 = vsub.f32 %v424, %v511
    %v537 = vsub.f32 %v425, %v513
    %v538 = vsub.f32 %v426, %v515
    %v539 = vsub.f32 %v427, %v517
    %v540 = vsub.f32 %v428, %v519
    %v541 = vsub.f32 %v429, %v521
    %v542 = vsub.f32 %v430, %v523
    %v543 = vsub.f32 %v431, %v525
    %v544 = vsub.f32 %v432, %v527
    %v545 = vsub.f32 %v433, %v529
    %546 = vst [vmem:[%s4] sm:$0xff] %v530
    %547 = vst [vmem:[%s4 + $0x8] sm:$0xff] %v531
    %548 = vst [vmem:[%s4 + $0x10] sm:$0xff] %v532
    %549 = vst [vmem:[%s4 + $0x18] sm:$0xff] %v533
    %550 = vst [vmem:[%s4 + $0x20] sm:$0xff] %v534
    %551 = vst [vmem:[%s4 + $0x28] sm:$0xff] %v535
    %552 = vst [vmem:[%s4 + $0x30] sm:$0xff] %v536
    %553 = vst [vmem:[%s4 + $0x38] sm:$0xff] %v537
    %554 = vst [vmem:[%s4 + $0x40] sm:$0xff] %v538
    %555 = vst [vmem:[%s4 + $0x48] sm:$0xff] %v539
    %556 = vst [vmem:[%s4 + $0x50] sm:$0xff] %v540
    %557 = vst [vmem:[%s4 + $0x58] sm:$0xff] %v541
    %558 = vst [vmem:[%s4 + $0x60] sm:$0xff] %v542
    %559 = vst [vmem:[%s4 + $0x68] sm:$0xff] %v543
    %560 = vst [vmem:[%s4 + $0x70] sm:$0xff] %v544
    %561 = vst [vmem:[%s4 + $0x78] sm:$0xff] %v545
  $region25: #{gcn_forward.3} parent=0 // pred_fallthru
    _
  // Predicated region
  $region26: #{gcn_forward.3} parent=0 // pred_check
    _
  $region27: #{gcn_forward.3} parent=0 // pred_check_branch
    %563 = sbr.rel (0) target = $region29
  $region28: #{gcn_forward.3} parent=0 // pred_region
    _
  $region29: #{gcn_forward.3} parent=0 // pred_fallthru
    _
  // Predicated region
  $region30: #{gcn_forward.3} parent=0 // pred_check
    _
  $region31: #{gcn_forward.3} parent=0 // pred_check_branch
    %565 = sbr.rel (0) target = $region33
  $region32: #{gcn_forward.3} parent=0 // pred_region
    _
  $region33: #{gcn_forward.3} parent=0 // pred_fallthru
    _

// kernel: gcn_forward.2
$region0: #{gcn_forward.2}
  #allocation0 [shape = 'u32[]', space=smem, size = 0x4, offset = 0x4, fixed_abs, tag = 'smem constant byte address 0x4 - core index']
  #allocation1 [shape = 'u32[72,128]{1,0:T(1,128)}', space=vmem, size = 0x9000, scoped, tag = 'internal scratch']
  #allocation2 [shape = 'f32[128,128]{1,0:T(8,128)}', space=vmem, size = 0x10000, scoped, tag = 'scratch operand']
  %s0 = inlined_call_operand.vmem [shape: s8[128,128], index: 0, kind: input, shape index: {}]
  %s1 = inlined_call_operand.vmem [shape: bf16[128,128], index: 1, kind: input, shape index: {}]
  %s2 = inlined_call_operand.vmem [shape: bf16[128,128], index: 2, kind: input, shape index: {}]
  %s3 = inlined_call_operand.vmem [shape: f32[1,128], index: 3, kind: input, shape index: {}]
  %s4 = inlined_call_operand.vmem [shape: bf16[128,128], index: 4, kind: output, shape index: {}]
  %s5 = sld [smem:[#allocation0]]
  $region34: #{gcn_forward.2} parent=0
    _
  %s7 = ssub.s32 1, %s5
  %s8 = scalar_select 0, %s7, %s5
  // Predicated region
  $region2: #{gcn_forward.2} parent=0 // pred_check
    _
  $region3: #{gcn_forward.2} parent=0 // pred_check_branch
    %10 = sbr.rel (0) target = $region5
  $region4: #{gcn_forward.2} parent=0 // pred_region
    _
  $region5: #{gcn_forward.2} parent=0 // pred_fallthru
    _
  // Predicated region
  $region6: #{gcn_forward.2} parent=0 // pred_check
    _
  $region7: #{gcn_forward.2} parent=0 // pred_check_branch
    %12 = sbr.rel (0) target = $region9
  $region8: #{gcn_forward.2} parent=0 // pred_region
    _
  $region9: #{gcn_forward.2} parent=0 // pred_fallthru
    _
  // Predicated region
  $region10: #{gcn_forward.2} parent=0 // pred_check
    _
  $region11: #{gcn_forward.2} parent=0 // pred_check_branch
    %14 = sbr.rel (0) target = $region13
  $region12: #{gcn_forward.2} parent=0 // pred_region
    _
  $region13: #{gcn_forward.2} parent=0 // pred_fallthru
    _
  // Predicated region
  $region14: #{gcn_forward.2} parent=0 // pred_check
    _
  $region15: #{gcn_forward.2} parent=0 // pred_check_branch
    %16 = sbr.rel (0) target = $region17
  $region16: #{gcn_forward.2} parent=0 // pred_region
    _
  $region17: #{gcn_forward.2} parent=0 // pred_fallthru
    _
  %p17 = scmp.eq.s32.totalorder 0, 0
  // Predicated region
  $region18: #{gcn_forward.2} parent=0 // pred_check
    %p18 = pneg %p17
  $region19: #{gcn_forward.2} parent=0 // pred_check_branch
    %20 = sbr.rel (%p18) target = $region21
  $region20: #{gcn_forward.2} parent=0 // pred_region
    %21 = vst [vmem:[#allocation2] sm:$0xff] 0.0
    %22 = vst [vmem:[#allocation2 + $0x8] sm:$0xff] 0.0
    %23 = vst [vmem:[#allocation2 + $0x10] sm:$0xff] 0.0
    %24 = vst [vmem:[#allocation2 + $0x18] sm:$0xff] 0.0
    %25 = vst [vmem:[#allocation2 + $0x20] sm:$0xff] 0.0
    %26 = vst [vmem:[#allocation2 + $0x28] sm:$0xff] 0.0
    %27 = vst [vmem:[#allocation2 + $0x30] sm:$0xff] 0.0
    %28 = vst [vmem:[#allocation2 + $0x38] sm:$0xff] 0.0
    %29 = vst [vmem:[#allocation2 + $0x40] sm:$0xff] 0.0
    %30 = vst [vmem:[#allocation2 + $0x48] sm:$0xff] 0.0
    %31 = vst [vmem:[#allocation2 + $0x50] sm:$0xff] 0.0
    %32 = vst [vmem:[#allocation2 + $0x58] sm:$0xff] 0.0
    %33 = vst [vmem:[#allocation2 + $0x60] sm:$0xff] 0.0
    %34 = vst [vmem:[#allocation2 + $0x68] sm:$0xff] 0.0
    %35 = vst [vmem:[#allocation2 + $0x70] sm:$0xff] 0.0
    %36 = vst [vmem:[#allocation2 + $0x78] sm:$0xff] 0.0
  $region21: #{gcn_forward.2} parent=0 // pred_fallthru
    _
  %v37 = vld [vmem:[#allocation2] sm:$0xff]
  %v38 = vld [vmem:[#allocation2 + $0x8] sm:$0xff]
  %v39 = vld [vmem:[#allocation2 + $0x10] sm:$0xff]
  %v40 = vld [vmem:[#allocation2 + $0x18] sm:$0xff]
  %v41 = vld [vmem:[#allocation2 + $0x20] sm:$0xff]
  %v42 = vld [vmem:[#allocation2 + $0x28] sm:$0xff]
  %v43 = vld [vmem:[#allocation2 + $0x30] sm:$0xff]
  %v44 = vld [vmem:[#allocation2 + $0x38] sm:$0xff]
  %v45 = vld [vmem:[#allocation2 + $0x40] sm:$0xff]
  %v46 = vld [vmem:[#allocation2 + $0x48] sm:$0xff]
  %v47 = vld [vmem:[#allocation2 + $0x50] sm:$0xff]
  %v48 = vld [vmem:[#allocation2 + $0x58] sm:$0xff]
  %v49 = vld [vmem:[#allocation2 + $0x60] sm:$0xff]
  %v50 = vld [vmem:[#allocation2 + $0x68] sm:$0xff]
  %v51 = vld [vmem:[#allocation2 + $0x70] sm:$0xff]
  %v52 = vld [vmem:[#allocation2 + $0x78] sm:$0xff]
  %v53 = vld [vmem:[%s0] sm:$0xff]
  %v54 = vld [vmem:[%s0 + $0x8] sm:$0xff]
  %v55 = vld [vmem:[%s0 + $0x10] sm:$0xff]
  %v56 = vld [vmem:[%s0 + $0x18] sm:$0xff]
  %v57 = vunpack.c.0.s8 %v53
  %v58 = vunpack.c.1.s8 %v53
  %v59 = vunpack.c.2.s8 %v53
  %v60 = vunpack.c.3.s8 %v53
  %v61 = vunpack.c.0.s8 %v54
  %v62 = vunpack.c.1.s8 %v54
  %v63 = vunpack.c.2.s8 %v54
  %v64 = vunpack.c.3.s8 %v54
  %v65 = vunpack.c.0.s8 %v55
  %v66 = vunpack.c.1.s8 %v55
  %v67 = vunpack.c.2.s8 %v55
  %v68 = vunpack.c.3.s8 %v55
  %v69 = vunpack.c.0.s8 %v56
  %v70 = vunpack.c.1.s8 %v56
  %v71 = vunpack.c.2.s8 %v56
  %v72 = vunpack.c.3.s8 %v56
  %v73 = vcvt.s32.f32 %v57
  %v74 = vcvt.s32.f32 %v58
  %v75 = vcvt.s32.f32 %v59
  %v76 = vcvt.s32.f32 %v60
  %v77 = vcvt.s32.f32 %v61
  %v78 = vcvt.s32.f32 %v62
  %v79 = vcvt.s32.f32 %v63
  %v80 = vcvt.s32.f32 %v64
  %v81 = vcvt.s32.f32 %v65
  %v82 = vcvt.s32.f32 %v66
  %v83 = vcvt.s32.f32 %v67
  %v84 = vcvt.s32.f32 %v68
  %v85 = vcvt.s32.f32 %v69
  %v86 = vcvt.s32.f32 %v70
  %v87 = vcvt.s32.f32 %v71
  %v88 = vcvt.s32.f32 %v72
  %v89 = vpack.c.bf16 %v74, %v73
  %v90 = vpack.c.bf16 %v76, %v75
  %v91 = vpack.c.bf16 %v78, %v77
  %v92 = vpack.c.bf16 %v80, %v79
  %v93 = vpack.c.bf16 %v82, %v81
  %v94 = vpack.c.bf16 %v84, %v83
  %v95 = vpack.c.bf16 %v86, %v85
  %v96 = vpack.c.bf16 %v88, %v87
  %v97 = vld [vmem:[%s1] sm:$0xf]
  %v98 = vld [vmem:[%s1 + $0x4] sm:$0xf]
  %v99 = vld [vmem:[%s1 + $0x8] sm:$0xf]
  %v100 = vld [vmem:[%s1 + $0xc] sm:$0xf]
  %v101 = vld [vmem:[%s1 + $0x10] sm:$0xf]
  %v102 = vld [vmem:[%s1 + $0x14] sm:$0xf]
  %v103 = vld [vmem:[%s1 + $0x18] sm:$0xf]
  %v104 = vld [vmem:[%s1 + $0x1c] sm:$0xf]
  %v105 = vld [vmem:[%s1 + $0x20] sm:$0xf]
  %v106 = vld [vmem:[%s1 + $0x24] sm:$0xf]
  %v107 = vld [vmem:[%s1 + $0x28] sm:$0xf]
  %v108 = vld [vmem:[%s1 + $0x2c] sm:$0xf]
  %v109 = vld [vmem:[%s1 + $0x30] sm:$0xf]
  %v110 = vld [vmem:[%s1 + $0x34] sm:$0xf]
  %v111 = vld [vmem:[%s1 + $0x38] sm:$0xf]
  %v112 = vld [vmem:[%s1 + $0x3c] sm:$0xf]
  %v129 = vunpack.c.l.b16 %v97
  %v130 = vunpack.c.l.b16 %v98
  %v131 = vunpack.c.l.b16 %v99
  %v132 = vunpack.c.l.b16 %v100
  %v133 = vunpack.c.l.b16 %v101
  %v134 = vunpack.c.l.b16 %v102
  %v135 = vunpack.c.l.b16 %v103
  %v136 = vunpack.c.l.b16 %v104
  %v137 = vunpack.c.l.b16 %v105
  %v138 = vunpack.c.l.b16 %v106
  %v139 = vunpack.c.l.b16 %v107
  %v140 = vunpack.c.l.b16 %v108
  %v141 = vunpack.c.l.b16 %v109
  %v142 = vunpack.c.l.b16 %v110
  %v143 = vunpack.c.l.b16 %v111
  %v144 = vunpack.c.l.b16 %v112
  %v145 = vpack.c.b16 %v130, %v129
  %v146 = vpack.c.b16 %v132, %v131
  %v147 = vpack.c.b16 %v134, %v133
  %v148 = vpack.c.b16 %v136, %v135
  %v149 = vpack.c.b16 %v138, %v137
  %v150 = vpack.c.b16 %v140, %v139
  %v151 = vpack.c.b16 %v142, %v141
  %v152 = vpack.c.b16 %v144, %v143
  %161 = vmatpush.bf16.msra.mxu0 %v152
  %162 = vmatpush.bf16.msra.mxu0 %v151
  %163 = vmatpush.bf16.msra.mxu0 %v150
  %164 = vmatpush.bf16.msra.mxu0 %v149
  %165 = vmatpush.bf16.msra.mxu0 %v148
  %166 = vmatpush.bf16.msra.mxu0 %v147
  %167 = vmatpush.bf16.msra.mxu0 %v146
  %168 = vmatpush.bf16.msra.mxu0 %v145
  %169 = vmatmul.bf16.gmra.mxu0 %v89
  %v170 = vpop.f32.mrf.mxu0
  %v171 = vadd.f32 0.0, %v170
  %v172 = vpop.f32.mrf.mxu0
  %v173 = vadd.f32 0.0, %v172
  %174 = vmatmul.bf16.gmra.mxu0 %v90
  %v175 = vpop.f32.mrf.mxu0
  %v176 = vadd.f32 0.0, %v175
  %v177 = vpop.f32.mrf.mxu0
  %v178 = vadd.f32 0.0, %v177
  %179 = vmatmul.bf16.gmra.mxu0 %v91
  %v180 = vpop.f32.mrf.mxu0
  %v181 = vadd.f32 0.0, %v180
  %v182 = vpop.f32.mrf.mxu0
  %v183 = vadd.f32 0.0, %v182
  %184 = vmatmul.bf16.gmra.mxu0 %v92
  %v185 = vpop.f32.mrf.mxu0
  %v186 = vadd.f32 0.0, %v185
  %v187 = vpop.f32.mrf.mxu0
  %v188 = vadd.f32 0.0, %v187
  %189 = vmatmul.bf16.gmra.mxu0 %v93
  %v190 = vpop.f32.mrf.mxu0
  %v191 = vadd.f32 0.0, %v190
  %v192 = vpop.f32.mrf.mxu0
  %v193 = vadd.f32 0.0, %v192
  %194 = vmatmul.bf16.gmra.mxu0 %v94
  %v195 = vpop.f32.mrf.mxu0
  %v196 = vadd.f32 0.0, %v195
  %v197 = vpop.f32.mrf.mxu0
  %v198 = vadd.f32 0.0, %v197
  %199 = vmatmul.bf16.gmra.mxu0 %v95
  %v200 = vpop.f32.mrf.mxu0
  %v201 = vadd.f32 0.0, %v200
  %v202 = vpop.f32.mrf.mxu0
  %v203 = vadd.f32 0.0, %v202
  %204 = vmatmul.bf16.gmra.mxu0 %v96
  %v205 = vpop.f32.mrf.mxu0
  %v206 = vadd.f32 0.0, %v205
  %v207 = vpop.f32.mrf.mxu0
  %v208 = vadd.f32 0.0, %v207
  %209 = vdwg.mxu0
  %v210 = vadd.f32 %v37, %v171
  %v211 = vadd.f32 %v38, %v173
  %v212 = vadd.f32 %v39, %v176
  %v213 = vadd.f32 %v40, %v178
  %v214 = vadd.f32 %v41, %v181
  %v215 = vadd.f32 %v42, %v183
  %v216 = vadd.f32 %v43, %v186
  %v217 = vadd.f32 %v44, %v188
  %v218 = vadd.f32 %v45, %v191
  %v219 = vadd.f32 %v46, %v193
  %v220 = vadd.f32 %v47, %v196
  %v221 = vadd.f32 %v48, %v198
  %v222 = vadd.f32 %v49, %v201
  %v223 = vadd.f32 %v50, %v203
  %v224 = vadd.f32 %v51, %v206
  %v225 = vadd.f32 %v52, %v208
  %226 = vst [vmem:[#allocation2] sm:$0xff] %v210
  %227 = vst [vmem:[#allocation2 + $0x8] sm:$0xff] %v211
  %228 = vst [vmem:[#allocation2 + $0x10] sm:$0xff] %v212
  %229 = vst [vmem:[#allocation2 + $0x18] sm:$0xff] %v213
  %230 = vst [vmem:[#allocation2 + $0x20] sm:$0xff] %v214
  %231 = vst [vmem:[#allocation2 + $0x28] sm:$0xff] %v215
  %232 = vst [vmem:[#allocation2 + $0x30] sm:$0xff] %v216
  %233 = vst [vmem:[#allocation2 + $0x38] sm:$0xff] %v217
  %234 = vst [vmem:[#allocation2 + $0x40] sm:$0xff] %v218
  %235 = vst [vmem:[#allocation2 + $0x48] sm:$0xff] %v219
  %236 = vst [vmem:[#allocation2 + $0x50] sm:$0xff] %v220
  %237 = vst [vmem:[#allocation2 + $0x58] sm:$0xff] %v221
  %238 = vst [vmem:[#allocation2 + $0x60] sm:$0xff] %v222
  %239 = vst [vmem:[#allocation2 + $0x68] sm:$0xff] %v223
  %240 = vst [vmem:[#allocation2 + $0x70] sm:$0xff] %v224
  %241 = vst [vmem:[#allocation2 + $0x78] sm:$0xff] %v225
  // Predicated region
  $region22: #{gcn_forward.2} parent=0 // pred_check
    %p242 = pneg %p17
  $region23: #{gcn_forward.2} parent=0 // pred_check_branch
    %244 = sbr.rel (%p242) target = $region25
  $region24: #{gcn_forward.2} parent=0 // pred_region
    %v245 = vld [vmem:[#allocation2] sm:$0xff]
    %v246 = vld [vmem:[#allocation2 + $0x8] sm:$0xff]
    %v247 = vld [vmem:[#allocation2 + $0x10] sm:$0xff]
    %v248 = vld [vmem:[#allocation2 + $0x18] sm:$0xff]
    %v249 = vld [vmem:[#allocation2 + $0x20] sm:$0xff]
    %v250 = vld [vmem:[#allocation2 + $0x28] sm:$0xff]
    %v251 = vld [vmem:[#allocation2 + $0x30] sm:$0xff]
    %v252 = vld [vmem:[#allocation2 + $0x38] sm:$0xff]
    %v253 = vld [vmem:[#allocation2 + $0x40] sm:$0xff]
    %v254 = vld [vmem:[#allocation2 + $0x48] sm:$0xff]
    %v255 = vld [vmem:[#allocation2 + $0x50] sm:$0xff]
    %v256 = vld [vmem:[#allocation2 + $0x58] sm:$0xff]
    %v257 = vld [vmem:[#allocation2 + $0x60] sm:$0xff]
    %v258 = vld [vmem:[#allocation2 + $0x68] sm:$0xff]
    %v259 = vld [vmem:[#allocation2 + $0x70] sm:$0xff]
    %v260 = vld [vmem:[#allocation2 + $0x78] sm:$0xff]
    %v261 = vpack.c.bf16 %v246, %v245
    %v262 = vpack.c.bf16 %v248, %v247
    %v263 = vpack.c.bf16 %v250, %v249
    %v264 = vpack.c.bf16 %v252, %v251
    %v265 = vpack.c.bf16 %v254, %v253
    %v266 = vpack.c.bf16 %v256, %v255
    %v267 = vpack.c.bf16 %v258, %v257
    %v268 = vpack.c.bf16 %v260, %v259
    %v269 = vld [vmem:[%s2] sm:$0xf]
    %v270 = vld [vmem:[%s2 + $0x4] sm:$0xf]
    %v271 = vld [vmem:[%s2 + $0x8] sm:$0xf]
    %v272 = vld [vmem:[%s2 + $0xc] sm:$0xf]
    %v273 = vld [vmem:[%s2 + $0x10] sm:$0xf]
    %v274 = vld [vmem:[%s2 + $0x14] sm:$0xf]
    %v275 = vld [vmem:[%s2 + $0x18] sm:$0xf]
    %v276 = vld [vmem:[%s2 + $0x1c] sm:$0xf]
    %v277 = vld [vmem:[%s2 + $0x20] sm:$0xf]
    %v278 = vld [vmem:[%s2 + $0x24] sm:$0xf]
    %v279 = vld [vmem:[%s2 + $0x28] sm:$0xf]
    %v280 = vld [vmem:[%s2 + $0x2c] sm:$0xf]
    %v281 = vld [vmem:[%s2 + $0x30] sm:$0xf]
    %v282 = vld [vmem:[%s2 + $0x34] sm:$0xf]
    %v283 = vld [vmem:[%s2 + $0x38] sm:$0xf]
    %v284 = vld [vmem:[%s2 + $0x3c] sm:$0xf]
    %v285 = vld [vmem:[%s3] sm:$0x1]
    %v287 = vperm.slane %v285, 0
    %v305 = vunpack.c.l.b16 %v269
    %v306 = vunpack.c.l.b16 %v270
    %v307 = vunpack.c.l.b16 %v271
    %v308 = vunpack.c.l.b16 %v272
    %v309 = vunpack.c.l.b16 %v273
    %v310 = vunpack.c.l.b16 %v274
    %v311 = vunpack.c.l.b16 %v275
    %v312 = vunpack.c.l.b16 %v276
    %v313 = vunpack.c.l.b16 %v277
    %v314 = vunpack.c.l.b16 %v278
    %v315 = vunpack.c.l.b16 %v279
    %v316 = vunpack.c.l.b16 %v280
    %v317 = vunpack.c.l.b16 %v281
    %v318 = vunpack.c.l.b16 %v282
    %v319 = vunpack.c.l.b16 %v283
    %v320 = vunpack.c.l.b16 %v284
    %v321 = vpack.c.b16 %v306, %v305
    %v322 = vpack.c.b16 %v308, %v307
    %v323 = vpack.c.b16 %v310, %v309
    %v324 = vpack.c.b16 %v312, %v311
    %v325 = vpack.c.b16 %v314, %v313
    %v326 = vpack.c.b16 %v316, %v315
    %v327 = vpack.c.b16 %v318, %v317
    %v328 = vpack.c.b16 %v320, %v319
    %337 = vmatpush.bf16.msra.mxu0 %v328
    %338 = vmatpush.bf16.msra.mxu0 %v327
    %339 = vmatpush.bf16.msra.mxu0 %v326
    %340 = vmatpush.bf16.msra.mxu0 %v325
    %341 = vmatpush.bf16.msra.mxu0 %v324
    %342 = vmatpush.bf16.msra.mxu0 %v323
    %343 = vmatpush.bf16.msra.mxu0 %v322
    %344 = vmatpush.bf16.msra.mxu0 %v321
    %345 = vmatmul.bf16.gmra.mxu0 %v261
    %v346 = vpop.f32.mrf.mxu0
    %v347 = vadd.f32 %v287, %v346
    %v348 = vpop.f32.mrf.mxu0
    %v349 = vadd.f32 %v287, %v348
    %350 = vmatmul.bf16.gmra.mxu0 %v262
    %v351 = vpop.f32.mrf.mxu0
    %v352 = vadd.f32 %v287, %v351
    %v353 = vpop.f32.mrf.mxu0
    %v354 = vadd.f32 %v287, %v353
    %355 = vmatmul.bf16.gmra.mxu0 %v263
    %v356 = vpop.f32.mrf.mxu0
    %v357 = vadd.f32 %v287, %v356
    %v358 = vpop.f32.mrf.mxu0
    %v359 = vadd.f32 %v287, %v358
    %360 = vmatmul.bf16.gmra.mxu0 %v264
    %v361 = vpop.f32.mrf.mxu0
    %v362 = vadd.f32 %v287, %v361
    %v363 = vpop.f32.mrf.mxu0
    %v364 = vadd.f32 %v287, %v363
    %365 = vmatmul.bf16.gmra.mxu0 %v265
    %v366 = vpop.f32.mrf.mxu0
    %v367 = vadd.f32 %v287, %v366
    %v368 = vpop.f32.mrf.mxu0
    %v369 = vadd.f32 %v287, %v368
    %370 = vmatmul.bf16.gmra.mxu0 %v266
    %v371 = vpop.f32.mrf.mxu0
    %v372 = vadd.f32 %v287, %v371
    %v373 = vpop.f32.mrf.mxu0
    %v374 = vadd.f32 %v287, %v373
    %375 = vmatmul.bf16.gmra.mxu0 %v267
    %v376 = vpop.f32.mrf.mxu0
    %v377 = vadd.f32 %v287, %v376
    %v378 = vpop.f32.mrf.mxu0
    %v379 = vadd.f32 %v287, %v378
    %380 = vmatmul.bf16.gmra.mxu0 %v268
    %v381 = vpop.f32.mrf.mxu0
    %v382 = vadd.f32 %v287, %v381
    %v383 = vpop.f32.mrf.mxu0
    %v384 = vadd.f32 %v287, %v383
    %385 = vdwg.mxu0
    %v386 = vmax.f32 %v347, 0.0
    %v387 = vmax.f32 %v349, 0.0
    %v388 = vmax.f32 %v352, 0.0
    %v389 = vmax.f32 %v354, 0.0
    %v390 = vmax.f32 %v357, 0.0
    %v391 = vmax.f32 %v359, 0.0
    %v392 = vmax.f32 %v362, 0.0
    %v393 = vmax.f32 %v364, 0.0
    %v394 = vmax.f32 %v367, 0.0
    %v395 = vmax.f32 %v369, 0.0
    %v396 = vmax.f32 %v372, 0.0
    %v397 = vmax.f32 %v374, 0.0
    %v398 = vmax.f32 %v377, 0.0
    %v399 = vmax.f32 %v379, 0.0
    %v400 = vmax.f32 %v382, 0.0
    %v401 = vmax.f32 %v384, 0.0
    %v402 = vpack.c.bf16 %v386, %v386
    %v403 = vpack.c.bf16 %v387, %v387
    %v404 = vpack.c.bf16 %v388, %v388
    %v405 = vpack.c.bf16 %v389, %v389
    %v406 = vpack.c.bf16 %v390, %v390
    %v407 = vpack.c.bf16 %v391, %v391
    %v408 = vpack.c.bf16 %v392, %v392
    %v409 = vpack.c.bf16 %v393, %v393
    %v410 = vpack.c.bf16 %v394, %v394
    %v411 = vpack.c.bf16 %v395, %v395
    %v412 = vpack.c.bf16 %v396, %v396
    %v413 = vpack.c.bf16 %v397, %v397
    %v414 = vpack.c.bf16 %v398, %v398
    %v415 = vpack.c.bf16 %v399, %v399
    %v416 = vpack.c.bf16 %v400, %v400
    %v417 = vpack.c.bf16 %v401, %v401
    %418 = vst [vmem:[%s4] sm:$0xf] %v402
    %419 = vst [vmem:[%s4 + $0x4] sm:$0xf] %v403
    %420 = vst [vmem:[%s4 + $0x8] sm:$0xf] %v404
    %421 = vst [vmem:[%s4 + $0xc] sm:$0xf] %v405
    %422 = vst [vmem:[%s4 + $0x10] sm:$0xf] %v406
    %423 = vst [vmem:[%s4 + $0x14] sm:$0xf] %v407
    %424 = vst [vmem:[%s4 + $0x18] sm:$0xf] %v408
    %425 = vst [vmem:[%s4 + $0x1c] sm:$0xf] %v409
    %426 = vst [vmem:[%s4 + $0x20] sm:$0xf] %v410
    %427 = vst [vmem:[%s4 + $0x24] sm:$0xf] %v411
    %428 = vst [vmem:[%s4 + $0x28] sm:$0xf] %v412
    %429 = vst [vmem:[%s4 + $0x2c] sm:$0xf] %v413
    %430 = vst [vmem:[%s4 + $0x30] sm:$0xf] %v414
    %431 = vst [vmem:[%s4 + $0x34] sm:$0xf] %v415
    %432 = vst [vmem:[%s4 + $0x38] sm:$0xf] %v416
    %433 = vst [vmem:[%s4 + $0x3c] sm:$0xf] %v417
  $region25: #{gcn_forward.2} parent=0 // pred_fallthru
    _
  // Predicated region
  $region26: #{gcn_forward.2} parent=0 // pred_check
    _
  $region27: #{gcn_forward.2} parent=0 // pred_check_branch
    %435 = sbr.rel (0) target = $region29
  $region28: #{gcn_forward.2} parent=0 // pred_region
    _
  $region29: #{gcn_forward.2} parent=0 // pred_fallthru
    _
  // Predicated region
  $region30: #{gcn_forward.2} parent=0 // pred_check
    _
  $region31: #{gcn_forward.2} parent=0 // pred_check_branch
    %437 = sbr.rel (0) target = $region33
  $region32: #{gcn_forward.2} parent=0 // pred_region
    _
  $region33: #{gcn_forward.2} parent=0 // pred_fallthru
    _

</llo_original>
